<compile_context>
chip_gen: v7x
topology: tpu7x:2x2x1
jax: 0.10.0
libtpu: 0.0.40
codegen_flags: <defaults>
</compile_context>

<pallas_src>
import jax
import jax.numpy as jnp
from jax.experimental import pallas as pl
from jax.experimental.pallas import tpu as pltpu

_LANE = 128          # TPU lane width (last-dim vreg axis)
_ROW_ALIGN = 32      # covers f32 (8), bf16 (16) data and the int8 mask (32)


def _round_up(x, m):
    return ((x + m - 1) // m) * m


def _masked_seq_kernel(seq_ref, mask_ref, out_ref):
    # One (rows, C) block gated by a (rows, 1) int8 mask block.  Pure VPU
    # work: the (rows, 1) -> (rows, C) broadcast is a lane splat and
    # jnp.where keeps the stored dtype (no f32 widening when seq is bf16).
    m = mask_ref[...] != 0                       # (rows, 1) bool
    x = seq_ref[...]                             # (rows, C)
    out_ref[...] = jnp.where(m, x, jnp.zeros_like(x))


def masked_seq_feats(seq_feats, mask, *, block_rows=None,
                     target_block_bytes=2 * 1024 * 1024, buffers=2):
    """out[b, l, c] = seq_feats[b, l, c] if mask[b, l] else 0, via Pallas.

    Layout: (B, L, C) is flattened to a lane-dense (B*L, C) 2-D problem
    (free bitcast; C stays on the TPU lane axis).  If C is not a multiple of
    128 it is zero-padded in the wrapper so every store is an unmasked
    full-width vst.  The single grid axis tiles rows so HBM<->VMEM traffic is
    software-pipelined, and is marked "parallel" so dual-core parts (v7x) can
    shard the grid.  ~2 MiB data blocks sit at the measured HBM-roofline
    plateau on v5e/v6e/v7x while keeping the double-buffered footprint small.
    """
    B, L, C = seq_feats.shape
    M = B * L
    itemsize = jnp.dtype(seq_feats.dtype).itemsize

    # --- lane-dense channel slab -------------------------------------------
    C_pad = _round_up(C, _LANE)
    seq2d = seq_feats.reshape(M, C)
    if C_pad != C:
        seq2d = jnp.pad(seq2d, ((0, 0), (0, C_pad - C)))

    # --- mask: smallest dtype (lane padding makes wide dtypes expensive) ----
    mask2d = mask.reshape(M, 1).astype(jnp.int8)

    # --- row tiling ----------------------------------------------------------
    if block_rows is None:
        per_row_bytes = C_pad * itemsize
        rows = (target_block_bytes // max(1, per_row_bytes)) \
            // _ROW_ALIGN * _ROW_ALIGN
        block_rows = max(_ROW_ALIGN, rows)
    block_rows = max(1, min(int(block_rows), M))
    if block_rows < M:
        # Aligned blocks avoid packed-sublane relayouts / masked stores.
        block_rows = min(_round_up(block_rows, _ROW_ALIGN), M)
    # v7x is 2 TC/chip: a "parallel" axis is sharded across cores, so prefer
    # at least two blocks once the problem can be split on an aligned boundary.
    # TODO(synk): on v7x also try dimension_semantics=(pltpu.CORE_PARALLEL,).
    if block_rows >= M and M >= 2 * _ROW_ALIGN:
        block_rows = _round_up(pl.cdiv(M, 2), _ROW_ALIGN)

    grid = (pl.cdiv(M, block_rows),)

    # --- VMEM accounting (incl. lane-padded mask) + explicit scoped limit ---
    data_block_bytes = block_rows * C_pad * itemsize
    mask_block_bytes = block_rows * _LANE * 1           # int8, lane-padded
    footprint = buffers * 2 * data_block_bytes + 2 * mask_block_bytes
    # Headroom above the pipeline footprint, floor above v5e's 16 MiB scoped
    # default, cap well under v7x's 64 MiB physical VMEM.
    vmem_limit = int(min(max(footprint * 2, 16 << 20), 48 << 20))

    pipeline_mode = pl.Buffered(buffers) if buffers != 2 else None
    seq_spec = pl.BlockSpec((block_rows, C_pad), lambda i: (i, 0),
                            pipeline_mode=pipeline_mode)
    mask_spec = pl.BlockSpec((block_rows, 1), lambda i: (i, 0))
    out_spec = pl.BlockSpec((block_rows, C_pad), lambda i: (i, 0),
                            pipeline_mode=pipeline_mode)

    out2d = pl.pallas_call(
        _masked_seq_kernel,
        out_shape=jax.ShapeDtypeStruct((M, C_pad), seq_feats.dtype),
        grid=grid,
        in_specs=[seq_spec, mask_spec],
        out_specs=out_spec,
        compiler_params=pltpu.CompilerParams(
            dimension_semantics=("parallel",),
            vmem_limit_bytes=vmem_limit),
        cost_estimate=pl.CostEstimate(
            flops=M * C_pad,
            transcendentals=0,
            bytes_accessed=2 * M * C_pad * itemsize + M),
    )(seq2d, mask2d)

    if C_pad != C:
        out2d = out2d[:, :C]
    return out2d.reshape(B, L, C)


class SequenceDiscriminator:
    """JAX/Pallas port of the (stub) SequenceDiscriminator module."""

    def __init__(self, **kwargs):
        # Matches the reference __init__: no parameters, no submodules.
        self.test = 1

    def forward(self, seq_feats, pair_feats, true_aa, residx, mask,
                no_recycles=None):
        """
        Inputs:
          seq_feats:  B x L x C       sequence features
          pair_feats: B x L x L x C   pair features (unused by the reference)
          true_aa:    B x L           (unused by the reference)
          residx:     B x L           (unused by the reference)
          mask:       B x L           boolean mask of valid residues

        Output: None (the reference forward has no return statement).
        """
        # TODO(synk): the reference forward only reads seq_feats.device and
        # returns None; there is no real compute to translate.  The masked
        # Pallas pass below merely touches seq_feats on the TPU; its result is
        # intentionally discarded, and under jit XLA may legally DCE it, which
        # matches the no-op reference semantics.
        _ = masked_seq_feats(seq_feats, mask)
        return None

    __call__ = forward


if __name__ == "__main__":
    key = jax.random.PRNGKey(0)
    k1, k2, k3 = jax.random.split(key, 3)

    # Lane-dense shapes: C is a multiple of 128 so output stores are
    # full-width vst (no masked partial stores), matching real model widths.
    B, L, C = 2, 16, 128
    seq_feats = jax.random.normal(k1, (B, L, C), dtype=jnp.float32)
    pair_feats = jax.random.normal(k2, (B, L, L, C), dtype=jnp.float32)
    true_aa = jax.random.randint(k3, (B, L), 0, 20, dtype=jnp.int32)
    residx = jnp.broadcast_to(jnp.arange(L, dtype=jnp.int32), (B, L))
    mask = residx < 12  # boolean (B, L) mask

    ref = seq_feats * mask[:, :, None].astype(seq_feats.dtype)
    out = jax.block_until_ready(masked_seq_feats(seq_feats, mask))
    assert out.shape == (B, L, C)
    assert jnp.array_equal(out, ref)

    # Multi-block grid + software pipeline, bf16 path (16-row sublane packing,
    # 32-aligned tiles keep bf16 data and int8 mask layouts clean).
    B2, L2, C2 = 2, 256, 128
    seq_bf16 = jax.random.normal(k2, (B2, L2, C2), dtype=jnp.float32
                                 ).astype(jnp.bfloat16)
    mask2 = jnp.broadcast_to(jnp.arange(L2) < 200, (B2, L2))
    ref2 = jnp.where(mask2[:, :, None], seq_bf16, jnp.zeros_like(seq_bf16))
    out2 = jax.block_until_ready(
        masked_seq_feats(seq_bf16, mask2, block_rows=64))
    assert out2.dtype == jnp.bfloat16
    assert jnp.array_equal(out2, ref2)

    # Ragged channel width exercises the lane-dense padding path (C -> 128).
    C3 = 96
    seq3 = jax.random.normal(k3, (B, L, C3), dtype=jnp.float32)
    ref3 = seq3 * mask[:, :, None].astype(seq3.dtype)
    out3 = jax.block_until_ready(masked_seq_feats(seq3, mask))
    assert out3.shape == (B, L, C3)
    assert jnp.array_equal(out3, ref3)

    # Module forward returns None, matching the PyTorch reference stub.
    disc = SequenceDiscriminator()
    result = disc(seq_feats, pair_feats, true_aa, residx, mask,
                  no_recycles=None)
    assert result is None

    print("KERNEL_OK")
</pallas_src>

<mosaic_0001>
module attributes {stable_mosaic.version = 11 : i64} {
  func.func @_masked_seq_kernel(%arg0: i32, %arg1: memref<32x128xf32, #tpu.memory_space<vmem>>, %arg2: memref<32x1xi8, #tpu.memory_space<vmem>>, %arg3: memref<32x128xf32, #tpu.memory_space<vmem>>) attributes {dimension_semantics = [#tpu.dimension_semantics<parallel>], iteration_bounds = array<i64: 1>, scalar_prefetch = 0 : i64, scratch_operands = 0 : i64, tpu.core_type = #tpu.core_type<tc>, window_params = [{transform_indices = @transform_0, window_bounds = array<i64: 32, 128>}, {transform_indices = @transform_1, window_bounds = array<i64: 32, 1>}, {transform_indices = @transform_2, window_bounds = array<i64: 32, 128>}]} {
    %c0 = arith.constant 0 : index
    %c0_0 = arith.constant 0 : index
    %0 = vector.load %arg2[%c0, %c0_0] : memref<32x1xi8, #tpu.memory_space<vmem>>, vector<32x1xi8>
    %c0_i8 = arith.constant 0 : i8
    %1 = vector.broadcast %c0_i8 : i8 to vector<32x1xi8>
    %2 = arith.cmpi ne, %0, %1 : vector<32x1xi8>
    %c0_1 = arith.constant 0 : index
    %c0_2 = arith.constant 0 : index
    %3 = vector.load %arg1[%c0_1, %c0_2] : memref<32x128xf32, #tpu.memory_space<vmem>>, vector<32x128xf32>
    %cst = arith.constant 0.000000e+00 : f32
    %4 = vector.broadcast %cst : f32 to vector<32x128xf32>
    %5 = vector.shape_cast %2 : vector<32x1xi1> to vector<32x1xi1>
    %6 = vector.broadcast %5 : vector<32x1xi1> to vector<32x128xi1>
    %7 = arith.select %6, %3, %4 : vector<32x128xi1>, vector<32x128xf32>
    %c0_3 = arith.constant 0 : index
    %c0_4 = arith.constant 0 : index
    %8 = vector.load %arg3[%c0_3, %c0_4] : memref<32x128xf32, #tpu.memory_space<vmem>>, vector<32x128xf32>
    tpu.vector_store %arg3[%c0_3, %c0_4], %7 {strides = array<i32>} : memref<32x128xf32, #tpu.memory_space<vmem>>, vector<32x128xf32>,
    return
  }
  func.func @transform_0(%arg0: i32) -> (i32, i32) {
    %c0_i32 = arith.constant 0 : i32
    %c0_i32_0 = arith.constant 0 : i32
    return %arg0, %c0_i32 : i32, i32
  }
  func.func @transform_1(%arg0: i32) -> (i32, i32) {
    %c0_i32 = arith.constant 0 : i32
    %c0_i32_0 = arith.constant 0 : i32
    return %arg0, %c0_i32 : i32, i32
  }
  func.func @transform_2(%arg0: i32) -> (i32, i32) {
    %c0_i32 = arith.constant 0 : i32
    %c0_i32_0 = arith.constant 0 : i32
    return %arg0, %c0_i32 : i32, i32
  }
}

</mosaic_0001>

<llo_original>
// kernel: tpu_custom_call.1
$region0: #{tpu_custom_call.1}
  #allocation0 [shape = 'u32[]', space=smem, size = 0x4, offset = 0x4, fixed_abs, tag = 'smem constant byte address 0x4 - core index']
  #allocation1 [shape = 'u32[144,128]{1,0:T(1,128)}', space=vmem, size = 0x12000, scoped, tag = 'internal scratch']
  %s0 = inlined_call_operand.hbm [shape: f32[32,128], index: 0, kind: input, shape index: {}]
  %s1 = inlined_call_operand.vmem [shape: s8[32,1], index: 1, kind: input, shape index: {}]
  %s2 = inlined_call_operand.hbm [shape: f32[32,128], index: 2, kind: output, shape index: {}]
  %s3 = sld [smem:[#allocation0]]
  $region22: #{tpu_custom_call.1} parent=0
    _
  %s5 = ssub.s32 1, %s3
  %s6 = scalar_select 0, %s5, %s3
  $region1: #{tpu_custom_call.1} parent=0
    #allocation2 [shape = 'u8[16384]{0}', space=vmem, size = 0x4000, scoped, tag = 'input window, operand 0, single buffered']
    #allocation3 [shape = 's32[1]{0}', space=sflag, size = 0x4, scoped, tag = 'scoped memory for tpu_custom_call.1']
    #allocation4 [shape = 's32[1]{0}', space=sflag, size = 0x4, scoped, tag = 'scoped memory for tpu_custom_call.1']
    #allocation5 [shape = 'u8[16384]{0}', space=vmem, size = 0x4000, scoped, tag = 'output window, operand 0, single buffered']
    %7 = vsyncpa [#allocation3], 0
    %8 = vsyncpa [#allocation4], 0
    // Predicated region
    $region2: #{tpu_custom_call.1} parent=1 // pred_check
      _
    $region3: #{tpu_custom_call.1} parent=1 // pred_check_branch
      %10 = sbr.rel (0) target = $region5
    $region4: #{tpu_custom_call.1} parent=1 // pred_region
      %s12 = ssub.s32 512, 512
      %13 = vsyncadd [#allocation3], %s12
      %s14 = sshll.u32 [#allocation2], 4
      %s15 = int_to_ptr.vmem [resolvable:$true] %s14
      %20 = dma.hbm_to_vmem [thread:$0]  %s0, 512, %s15, [#allocation3], 128, 128, 8
    $region5: #{tpu_custom_call.1} parent=1 // pred_fallthru
      _
    // Predicated region
    $region6: #{tpu_custom_call.1} parent=1 // pred_check
      _
    $region7: #{tpu_custom_call.1} parent=1 // pred_check_branch
      %22 = sbr.rel (0) target = $region9
    $region8: #{tpu_custom_call.1} parent=1 // pred_region
      _
    $region9: #{tpu_custom_call.1} parent=1 // pred_fallthru
      _
    // Predicated region
    $region10: #{tpu_custom_call.1} parent=1 // pred_check
      _
    $region11: #{tpu_custom_call.1} parent=1 // pred_check_branch
      %24 = sbr.rel (0) target = $region13
    $region12: #{tpu_custom_call.1} parent=1 // pred_region
      %25 = dma.done [#allocation3], 512
    $region13: #{tpu_custom_call.1} parent=1 // pred_fallthru
      _
    %v28 = vld [vmem:[%s1] sm:$0x3]
    %v29 = vld [vmem:[%s1 + $0x2] sm:$0x3]
    %v30 = vld [vmem:[%s1 + $0x4] sm:$0x3]
    %v31 = vld [vmem:[%s1 + $0x6] sm:$0x3]
    %vm32 = vnez %v28
    %vm33 = vnez %v29
    %vm34 = vnez %v30
    %vm35 = vnez %v31
    %v36 = vld [vmem:[#allocation2] sm:$0xff]
    %v37 = vld [vmem:[#allocation2 + $0x8] sm:$0xff]
    %v38 = vld [vmem:[#allocation2 + $0x10] sm:$0xff]
    %v39 = vld [vmem:[#allocation2 + $0x18] sm:$0xff]
    %v40 = vsel %vm32, 16843009, 0
    %v41 = vsel %vm33, 16843009, 0
    %v42 = vsel %vm34, 16843009, 0
    %v43 = vsel %vm35, 16843009, 0
    %v44 = vunpack.c.0.s8 %v40
    %v45 = vunpack.c.0.s8 %v41
    %v46 = vunpack.c.0.s8 %v42
    %v47 = vunpack.c.0.s8 %v43
    %vm48 = vcmp.ne.s32.totalorder %v44, 0
    %vm49 = vcmp.ne.s32.totalorder %v45, 0
    %vm50 = vcmp.ne.s32.totalorder %v46, 0
    %vm51 = vcmp.ne.s32.totalorder %v47, 0
    %v52 = vsel %vm48, 1, 0
    %v53 = vsel %vm49, 1, 0
    %v54 = vsel %vm50, 1, 0
    %v55 = vsel %vm51, 1, 0
    %56 = vset.pattern.permute.xlu0 0
    %57 = vperm.xlu0 %56, %v52
    %v58 = vpop.permute.xlu0 %57
    %59 = vset.pattern.permute.xlu0 0
    %60 = vperm.xlu0 %59, %v53
    %v61 = vpop.permute.xlu0 %60
    %62 = vset.pattern.permute.xlu0 0
    %63 = vperm.xlu0 %62, %v54
    %v64 = vpop.permute.xlu0 %63
    %65 = vset.pattern.permute.xlu0 0
    %66 = vperm.xlu0 %65, %v55
    %v67 = vpop.permute.xlu0 %66
    %vm68 = vcmp.eq.s32.totalorder %v58, 1
    %vm69 = vcmp.eq.s32.totalorder %v61, 1
    %vm70 = vcmp.eq.s32.totalorder %v64, 1
    %vm71 = vcmp.eq.s32.totalorder %v67, 1
    %v72 = vsel %vm68, %v36, 0.0
    %v73 = vsel %vm69, %v37, 0.0
    %v74 = vsel %vm70, %v38, 0.0
    %v75 = vsel %vm71, %v39, 0.0
    %76 = vst [vmem:[#allocation5] sm:$0xff] %v72
    %77 = vst [vmem:[#allocation5 + $0x8] sm:$0xff] %v73
    %78 = vst [vmem:[#allocation5 + $0x10] sm:$0xff] %v74
    %79 = vst [vmem:[#allocation5 + $0x18] sm:$0xff] %v75
    // Predicated region
    $region14: #{tpu_custom_call.1} parent=1 // pred_check
      _
    $region15: #{tpu_custom_call.1} parent=1 // pred_check_branch
      %81 = sbr.rel (0) target = $region17
    $region16: #{tpu_custom_call.1} parent=1 // pred_region
      %s83 = ssub.s32 512, 512
      %84 = vsyncadd [#allocation4], %s83
      %s85 = sshll.u32 [#allocation5], 4
      %s86 = int_to_ptr.vmem [resolvable:$true] %s85
      %91 = dma.vmem_to_hbm [thread:$0]  %s86, 512, %s2, [#allocation4], 128, 128, 8
    $region17: #{tpu_custom_call.1} parent=1 // pred_fallthru
      _
    // Predicated region
    $region18: #{tpu_custom_call.1} parent=1 // pred_check
      _
    $region19: #{tpu_custom_call.1} parent=1 // pred_check_branch
      %93 = sbr.rel (0) target = $region21
    $region20: #{tpu_custom_call.1} parent=1 // pred_region
      %94 = dma.done [#allocation4], 512
    $region21: #{tpu_custom_call.1} parent=1 // pred_fallthru
      _
    %95 = vsyncpa [#allocation3], 1
    %96 = vsyncpa [#allocation4], 1

</llo_original>
